<compile_context>
chip_gen: v6e
topology: v6e:2x2x1
jax: 0.10.0
libtpu: 0.0.40
codegen_flags: <defaults>
</compile_context>

<pallas_src>
import math
import functools

import jax
import jax.numpy as jnp
from jax.experimental import pallas as pl
from jax.experimental.pallas import tpu as pltpu


def nice_layer_kernel(x_ref, w1_ref, b1_ref, w2_ref, b2_ref, out_ref, *, half):
    x = x_ref[...]                       # (block_b, size) full-width tile
    x1 = x[:, :half]
    x2 = x[:, half:]

    # Hoist bias loads: one broadcast row each per tile.
    b1 = b1_ref[...]
    b2 = b2_ref[...]

    # dense1: Linear(half_size, hidden_size)
    h = jnp.dot(x1, w1_ref[...], preferred_element_type=jnp.float32) + b1
    # act1: Softplus(beta=1, threshold=20) matching F.softplus semantics:
    #   x > threshold -> x ; else log1p(exp(x))  (min() guards exp overflow in
    #   the untaken branch — also keeps garbage rows of a ragged tile finite).
    h = jnp.where(h > 20.0, h, jnp.log1p(jnp.exp(jnp.minimum(h, 20.0))))
    # dense2: Linear(hidden_size, half_size)
    m1 = jnp.dot(h, w2_ref[...], preferred_element_type=jnp.float32) + b2

    # Additive coupling (type=0, inv=False): Y = [x1 | x2 + m1].
    # Two direct slice stores — no concatenate, no temporary.
    out_ref[:, :half] = x1.astype(out_ref.dtype)
    out_ref[:, half:] = (x2 + m1).astype(out_ref.dtype)


def _round_up(n, m):
    return ((n + m - 1) // m) * m


def _tensorcores_per_chip():
    """Best-effort TensorCore count per chip (2 on v7x, 1 on v5e/v6e).
    Falls back to 1 if the runtime does not expose it."""
    try:
        info = pltpu.get_tpu_info()
    except Exception:
        return 1
    for name in ("num_cores", "core_count", "num_tensorcores",
                 "tensorcores_per_chip"):
        v = getattr(info, name, None)
        if isinstance(v, int) and v > 0:
            return v
    return 1


def _pick_block_b(B, cap=4096):
    """Batch-tile heuristic: one tile of up to `cap` rows (multiple of 8).

    Batches > cap naturally yield several "parallel" grid steps (feeding both
    v7x TensorCores); small batches are never split.  On multi-TC chips a split
    is only applied when every per-core tile stays >= 2048 rows, so the
    ~0.35 us per-grid-step overhead stays amortized."""
    bb = min(cap, _round_up(max(B, 1), 8))
    ncores = _tensorcores_per_chip()
    if ncores > 1:
        per_core = _round_up(-(-B // ncores), 8)
        if per_core >= 2048:
            bb = min(bb, per_core)
    return max(bb, 8)


def nice_layer_forward(X, w1, b1, w2, b2, *, block_b=None):
    """Pallas forward of NiceLayer (num_layers=2), type=0, inv=False."""
    B, size = X.shape
    half = size // 2
    hidden = w1.shape[1]

    if block_b is None:
        block_b = _pick_block_b(B)

    # No wrapper-side pad: Pallas handles the ragged last block (masked stores
    # past B; garbage reads only affect rows that are discarded).
    grid = (pl.cdiv(B, block_b),)

    # Biases as 2-D broadcast rows (kept in VMEM, not SMEM).
    b1_2d = b1.reshape(1, hidden)
    b2_2d = b2.reshape(1, half)

    kernel = functools.partial(nice_layer_kernel, half=half)

    return pl.pallas_call(
        kernel,
        out_shape=jax.ShapeDtypeStruct((B, size), X.dtype),
        grid_spec=pltpu.PrefetchScalarGridSpec(
            num_scalar_prefetch=0,
            grid=grid,
            in_specs=[
                pl.BlockSpec((block_b, size), lambda i: (i, 0)),   # X tile (full width)
                pl.BlockSpec((half, hidden),  lambda i: (0, 0)),   # W1 (full)
                pl.BlockSpec((1, hidden),     lambda i: (0, 0)),   # b1
                pl.BlockSpec((hidden, half),  lambda i: (0, 0)),   # W2 (full)
                pl.BlockSpec((1, half),       lambda i: (0, 0)),   # b2
            ],
            out_specs=pl.BlockSpec((block_b, size), lambda i: (i, 0)),
        ),
        compiler_params=pltpu.CompilerParams(
            dimension_semantics=("parallel",)),
    )(X, w1, b1_2d, w2, b2_2d)


def init_linear_params(key, in_features, out_features):
    """Deterministic init mirroring PyTorch kaiming_uniform_(a=sqrt(5)):
    weight ~ U(-1/sqrt(fan_in), 1/sqrt(fan_in)); bias same bound.
    Returned weight is already transposed to (in_features, out_features)."""
    kw, kb = jax.random.split(key)
    bound = 1.0 / math.sqrt(in_features)
    w = jax.random.uniform(kw, (in_features, out_features),
                           dtype=jnp.float32, minval=-bound, maxval=bound)
    b = jax.random.uniform(kb, (out_features,),
                           dtype=jnp.float32, minval=-bound, maxval=bound)
    return w, b


def nice_layer_reference(X, w1, b1, w2, b2):
    """Pure-JAX reference of NiceLayer.forward(X, type=0, inv=False)."""
    half = X.shape[1] // 2
    x1, x2 = X[:, :half], X[:, half:]
    h = x1 @ w1 + b1
    h = jnp.where(h > 20.0, h, jnp.log1p(jnp.exp(jnp.minimum(h, 20.0))))
    m1 = h @ w2 + b2
    return jnp.concatenate([x1, x2 + m1], axis=1)


if __name__ == "__main__":
    # Shapes consistent with the module: size=32 -> half=16, hidden=32, batch=64.
    B, SIZE, HIDDEN = 64, 32, 32
    HALF = SIZE // 2

    key = jax.random.PRNGKey(0)
    kx, k1, k2 = jax.random.split(key, 3)

    X = jax.random.normal(kx, (B, SIZE), dtype=jnp.float32)
    w1, b1 = init_linear_params(k1, HALF, HIDDEN)    # dense1: Linear(half, hidden)
    w2, b2 = init_linear_params(k2, HIDDEN, HALF)    # dense2: Linear(hidden, half)

    # TODO(synk): the num_layers=5 and deq branches (fixed-point DEQ iteration,
    # wandb logging, grads_backward_* families) are training/analysis paths and
    # are not part of the default forward; only the default 2-layer forward is
    # implemented as a kernel. Fusing the full multi-NiceLayer NICE stack into
    # one pallas_call (activations resident in VMEM) is the real
    # arithmetic-intensity fix and the next step when the flow model is ported.

    y = nice_layer_forward(X, w1, b1, w2, b2)
    y = jax.block_until_ready(y)

    y_ref = nice_layer_reference(X, w1, b1, w2, b2)
    assert y.shape == (B, SIZE)
    assert jnp.allclose(y, y_ref, atol=1e-5, rtol=1e-5), "mismatch vs reference"

    print("KERNEL_OK")
</pallas_src>

<mosaic_0001>
module attributes {stable_mosaic.version = 11 : i64} {
  func.func @nice_layer_kernel(%arg0: i32, %arg1: memref<64x32xf32, #tpu.memory_space<vmem>>, %arg2: memref<16x32xf32, #tpu.memory_space<vmem>>, %arg3: memref<1x32xf32, #tpu.memory_space<vmem>>, %arg4: memref<32x16xf32, #tpu.memory_space<vmem>>, %arg5: memref<1x16xf32, #tpu.memory_space<vmem>>, %arg6: memref<64x32xf32, #tpu.memory_space<vmem>>) attributes {dimension_semantics = [#tpu.dimension_semantics<parallel>], iteration_bounds = array<i64: 1>, scalar_prefetch = 0 : i64, scratch_operands = 0 : i64, tpu.core_type = #tpu.core_type<tc>, window_params = [{transform_indices = @transform_0, window_bounds = array<i64: 64, 32>}, {pipeline_mode = #tpu.pipeline_mode<synchronous>, transform_indices = @transform_1, window_bounds = array<i64: 16, 32>}, {pipeline_mode = #tpu.pipeline_mode<synchronous>, transform_indices = @transform_2, window_bounds = array<i64: 1, 32>}, {pipeline_mode = #tpu.pipeline_mode<synchronous>, transform_indices = @transform_3, window_bounds = array<i64: 32, 16>}, {pipeline_mode = #tpu.pipeline_mode<synchronous>, transform_indices = @transform_4, window_bounds = array<i64: 1, 16>}, {transform_indices = @transform_5, window_bounds = array<i64: 64, 32>}]} {
    %c0 = arith.constant 0 : index
    %c0_0 = arith.constant 0 : index
    %0 = vector.load %arg1[%c0, %c0_0] : memref<64x32xf32, #tpu.memory_space<vmem>>, vector<64x32xf32>
    %1 = vector.extract_strided_slice %0 {offsets = [0, 0], sizes = [64, 16], strides = [1, 1]} : vector<64x32xf32> to vector<64x16xf32>
    %2 = vector.extract_strided_slice %0 {offsets = [0, 16], sizes = [64, 16], strides = [1, 1]} : vector<64x32xf32> to vector<64x16xf32>
    %c0_1 = arith.constant 0 : index
    %c0_2 = arith.constant 0 : index
    %3 = vector.load %arg3[%c0_1, %c0_2] : memref<1x32xf32, #tpu.memory_space<vmem>>, vector<1x32xf32>
    %c0_3 = arith.constant 0 : index
    %c0_4 = arith.constant 0 : index
    %4 = vector.load %arg5[%c0_3, %c0_4] : memref<1x16xf32, #tpu.memory_space<vmem>>, vector<1x16xf32>
    %c0_5 = arith.constant 0 : index
    %c0_6 = arith.constant 0 : index
    %5 = vector.load %arg2[%c0_5, %c0_6] : memref<16x32xf32, #tpu.memory_space<vmem>>, vector<16x32xf32>
    %cst = arith.constant dense<0.000000e+00> : vector<64x32xf32>
    %6 = tpu.matmul %1, %5, %cst {dimension_numbers = #tpu.dot_dimension_numbers<[1], [0], [0], [1], [0, 0, 1, 1], [], []>} : vector<64x16xf32>, vector<16x32xf32>, vector<64x32xf32> -> vector<64x32xf32>
    %7 = vector.broadcast %3 : vector<1x32xf32> to vector<64x32xf32>
    %8 = arith.addf %6, %7 : vector<64x32xf32>
    %cst_7 = arith.constant 2.000000e+01 : f32
    %9 = vector.broadcast %cst_7 : f32 to vector<64x32xf32>
    %10 = arith.cmpf ogt, %8, %9 : vector<64x32xf32>
    %cst_8 = arith.constant 2.000000e+01 : f32
    %11 = vector.broadcast %cst_8 : f32 to vector<64x32xf32>
    %12 = arith.minimumf %8, %11 : vector<64x32xf32>
    %13 = math.exp %12 : vector<64x32xf32>
    %14 = math.log1p %13 : vector<64x32xf32>
    %15 = arith.select %10, %8, %14 : vector<64x32xi1>, vector<64x32xf32>
    %c0_9 = arith.constant 0 : index
    %c0_10 = arith.constant 0 : index
    %16 = vector.load %arg4[%c0_9, %c0_10] : memref<32x16xf32, #tpu.memory_space<vmem>>, vector<32x16xf32>
    %cst_11 = arith.constant dense<0.000000e+00> : vector<64x16xf32>
    %17 = tpu.matmul %15, %16, %cst_11 {dimension_numbers = #tpu.dot_dimension_numbers<[1], [0], [0], [1], [0, 0, 1, 1], [], []>} : vector<64x32xf32>, vector<32x16xf32>, vector<64x16xf32> -> vector<64x16xf32>
    %18 = vector.broadcast %4 : vector<1x16xf32> to vector<64x16xf32>
    %19 = arith.addf %17, %18 : vector<64x16xf32>
    %c0_12 = arith.constant 0 : index
    %c0_13 = arith.constant 0 : index
    %20 = vector.load %arg6[%c0_12, %c0_13] : memref<64x32xf32, #tpu.memory_space<vmem>>, vector<64x16xf32>
    tpu.vector_store %arg6[%c0_12, %c0_13], %1 {strides = array<i32>} : memref<64x32xf32, #tpu.memory_space<vmem>>, vector<64x16xf32>,
    %21 = arith.addf %2, %19 : vector<64x16xf32>
    %c0_14 = arith.constant 0 : index
    %c16 = arith.constant 16 : index
    %22 = vector.load %arg6[%c0_14, %c16] : memref<64x32xf32, #tpu.memory_space<vmem>>, vector<64x16xf32>
    tpu.vector_store %arg6[%c0_14, %c16], %21 {strides = array<i32>} : memref<64x32xf32, #tpu.memory_space<vmem>>, vector<64x16xf32>,
    return
  }
  func.func @transform_0(%arg0: i32) -> (i32, i32) {
    %c0_i32 = arith.constant 0 : i32
    %c0_i32_0 = arith.constant 0 : i32
    return %arg0, %c0_i32 : i32, i32
  }
  func.func @transform_1(%arg0: i32) -> (i32, i32) {
    %c0_i32 = arith.constant 0 : i32
    %c0_i32_0 = arith.constant 0 : i32
    %c0_i32_1 = arith.constant 0 : i32
    return %c0_i32, %c0_i32_0 : i32, i32
  }
  func.func @transform_2(%arg0: i32) -> (i32, i32) {
    %c0_i32 = arith.constant 0 : i32
    %c0_i32_0 = arith.constant 0 : i32
    %c0_i32_1 = arith.constant 0 : i32
    return %c0_i32, %c0_i32_0 : i32, i32
  }
  func.func @transform_3(%arg0: i32) -> (i32, i32) {
    %c0_i32 = arith.constant 0 : i32
    %c0_i32_0 = arith.constant 0 : i32
    %c0_i32_1 = arith.constant 0 : i32
    return %c0_i32, %c0_i32_0 : i32, i32
  }
  func.func @transform_4(%arg0: i32) -> (i32, i32) {
    %c0_i32 = arith.constant 0 : i32
    %c0_i32_0 = arith.constant 0 : i32
    %c0_i32_1 = arith.constant 0 : i32
    return %c0_i32, %c0_i32_0 : i32, i32
  }
  func.func @transform_5(%arg0: i32) -> (i32, i32) {
    %c0_i32 = arith.constant 0 : i32
    %c0_i32_0 = arith.constant 0 : i32
    return %arg0, %c0_i32 : i32, i32
  }
}

</mosaic_0001>

<llo_original>
// kernel: tpu_custom_call.1
$region0: #{tpu_custom_call.1}
  #allocation0 [shape = 'u32[]', space=smem, size = 0x4, offset = 0x4, fixed_abs, tag = 'smem constant byte address 0x4 - core index']
  #allocation1 [shape = 'u32[144,128]{1,0:T(1,128)}', space=vmem, size = 0x12000, scoped, tag = 'internal scratch']
  %s0 = inlined_call_operand.vmem [shape: f32[64,32], index: 0, kind: input, shape index: {}]
  %s1 = inlined_call_operand.vmem [shape: f32[16,32], index: 1, kind: input, shape index: {}]
  %s2 = inlined_call_operand.vmem [shape: f32[1,32], index: 2, kind: input, shape index: {}]
  %s3 = inlined_call_operand.vmem [shape: f32[32,16], index: 3, kind: input, shape index: {}]
  %s4 = inlined_call_operand.vmem [shape: f32[1,16], index: 4, kind: input, shape index: {}]
  %s5 = inlined_call_operand.vmem [shape: f32[64,32], index: 5, kind: output, shape index: {}]
  %s6 = sld [smem:[#allocation0]]
  $region30: #{tpu_custom_call.1} parent=0
    _
  %s8 = ssub.s32 1, %s6
  %s9 = scalar_select 0, %s8, %s6
  // Predicated region
  $region2: #{tpu_custom_call.1} parent=0 // pred_check
    _
  $region3: #{tpu_custom_call.1} parent=0 // pred_check_branch
    %11 = sbr.rel (0) target = $region5
  $region4: #{tpu_custom_call.1} parent=0 // pred_region
    _
  $region5: #{tpu_custom_call.1} parent=0 // pred_fallthru
    _
  // Predicated region
  $region6: #{tpu_custom_call.1} parent=0 // pred_check
    _
  $region7: #{tpu_custom_call.1} parent=0 // pred_check_branch
    %13 = sbr.rel (0) target = $region9
  $region8: #{tpu_custom_call.1} parent=0 // pred_region
    _
  $region9: #{tpu_custom_call.1} parent=0 // pred_fallthru
    _
  // Predicated region
  $region10: #{tpu_custom_call.1} parent=0 // pred_check
    _
  $region11: #{tpu_custom_call.1} parent=0 // pred_check_branch
    %15 = sbr.rel (0) target = $region13
  $region12: #{tpu_custom_call.1} parent=0 // pred_region
    _
  $region13: #{tpu_custom_call.1} parent=0 // pred_fallthru
    _
  // Predicated region
  $region14: #{tpu_custom_call.1} parent=0 // pred_check
    _
  $region15: #{tpu_custom_call.1} parent=0 // pred_check_branch
    %17 = sbr.rel (0) target = $region17
  $region16: #{tpu_custom_call.1} parent=0 // pred_region
    _
  $region17: #{tpu_custom_call.1} parent=0 // pred_fallthru
    _
  // Predicated region
  $region18: #{tpu_custom_call.1} parent=0 // pred_check
    _
  $region19: #{tpu_custom_call.1} parent=0 // pred_check_branch
    %19 = sbr.rel (0) target = $region21
  $region20: #{tpu_custom_call.1} parent=0 // pred_region
    _
  $region21: #{tpu_custom_call.1} parent=0 // pred_fallthru
    _
  %v20 = vld [vmem:[%s0] sm:$0xff]
  %v21 = vld [vmem:[%s0 + $0x8] sm:$0xff]
  %v22 = vld [vmem:[%s0 + $0x10] sm:$0xff]
  %v23 = vld [vmem:[%s0 + $0x18] sm:$0xff]
  %v24 = vld [vmem:[%s0 + $0x20] sm:$0xff]
  %v25 = vld [vmem:[%s0 + $0x28] sm:$0xff]
  %v26 = vld [vmem:[%s0 + $0x30] sm:$0xff]
  %v27 = vld [vmem:[%s0 + $0x38] sm:$0xff]
  %v28 = vld [vmem:[%s2] sm:$0x1]
  %v29 = vld [vmem:[%s4] sm:$0x1]
  %v30 = vld [vmem:[%s1] sm:$0xff]
  %v31 = vld [vmem:[%s1 + $0x8] sm:$0xff]
  %v33 = vlaneseq
  %v34 = vshrl.u32 %v33, 7
  %v35 = vsub.s32 0, %v34
  %v36 = vrot.slane %v28, %v35
  %vm38 = vcmask 130048
  %v40 = vsel %vm38, %v20, 0
  %v43 = vsel %vm38, %v21, 0
  %v46 = vsel %vm38, %v22, 0
  %v49 = vsel %vm38, %v23, 0
  %v52 = vsel %vm38, %v24, 0
  %v55 = vsel %vm38, %v25, 0
  %v58 = vsel %vm38, %v26, 0
  %v61 = vsel %vm38, %v27, 0
  %63 = vmatprep.subr.mxu0 0.0
  %64 = vmatpush1.msra.mxu0 0.0
  %65 = vmatprep.subr.mxu0 0.0
  %66 = vmatpush1.msra.mxu0 0.0
  %67 = vmatprep.subr.mxu0 0.0
  %68 = vmatpush1.msra.mxu0 0.0
  %69 = vmatprep.subr.mxu0 0.0
  %70 = vmatpush1.msra.mxu0 0.0
  %71 = vmatprep.subr.mxu0 0.0
  %72 = vmatpush1.msra.mxu0 0.0
  %73 = vmatprep.subr.mxu0 0.0
  %74 = vmatpush1.msra.mxu0 0.0
  %75 = vmatprep.subr.mxu0 0.0
  %76 = vmatpush1.msra.mxu0 0.0
  %77 = vmatprep.subr.mxu0 0.0
  %78 = vmatpush1.msra.mxu0 0.0
  %79 = vmatprep.subr.mxu0 0.0
  %80 = vmatpush1.msra.mxu0 0.0
  %81 = vmatprep.subr.mxu0 0.0
  %82 = vmatpush1.msra.mxu0 0.0
  %83 = vmatprep.subr.mxu0 0.0
  %84 = vmatpush1.msra.mxu0 0.0
  %85 = vmatprep.subr.mxu0 0.0
  %86 = vmatpush1.msra.mxu0 0.0
  %87 = vmatprep.subr.mxu0 0.0
  %88 = vmatpush1.msra.mxu0 0.0
  %89 = vmatprep.subr.mxu0 0.0
  %90 = vmatpush1.msra.mxu0 0.0
  %91 = vmatprep.subr.mxu0 0.0
  %92 = vmatpush1.msra.mxu0 %v31
  %93 = vmatprep.subr.mxu0 0.0
  %94 = vmatpush1.msra.mxu0 %v30
  %95 = vmatprep.subr.mxu0 0.0
  %96 = vmatpush2.msra.mxu0 0.0
  %97 = vmatprep.subr.mxu0 0.0
  %98 = vmatpush2.msra.mxu0 0.0
  %99 = vmatprep.subr.mxu0 0.0
  %100 = vmatpush2.msra.mxu0 0.0
  %101 = vmatprep.subr.mxu0 0.0
  %102 = vmatpush2.msra.mxu0 0.0
  %103 = vmatprep.subr.mxu0 0.0
  %104 = vmatpush2.msra.mxu0 0.0
  %105 = vmatprep.subr.mxu0 0.0
  %106 = vmatpush2.msra.mxu0 0.0
  %107 = vmatprep.subr.mxu0 0.0
  %108 = vmatpush2.msra.mxu0 0.0
  %109 = vmatprep.subr.mxu0 0.0
  %110 = vmatpush2.msra.mxu0 0.0
  %111 = vmatprep.subr.mxu0 0.0
  %112 = vmatpush2.msra.mxu0 0.0
  %113 = vmatprep.subr.mxu0 0.0
  %114 = vmatpush2.msra.mxu0 0.0
  %115 = vmatprep.subr.mxu0 0.0
  %116 = vmatpush2.msra.mxu0 0.0
  %117 = vmatprep.subr.mxu0 0.0
  %118 = vmatpush2.msra.mxu0 0.0
  %119 = vmatprep.subr.mxu0 0.0
  %120 = vmatpush2.msra.mxu0 0.0
  %121 = vmatprep.subr.mxu0 0.0
  %122 = vmatpush2.msra.mxu0 0.0
  %123 = vmatprep.subr.mxu0 0.0
  %124 = vmatpush2.msra.mxu0 0.0
  %125 = vmatprep.subr.mxu0 0.0
  %126 = vmatpush2.msra.mxu0 0.0
  %127 = vmatprep.mubr.f32.mxu0 0.0
  %128 = vmatmul.mubr.f32.gmra.mxu0 %v40
  %v129 = vpop.f32.mrf.mxu0
  %v130 = vadd.f32 %v36, %v129
  %v131 = vpop.f32.mrf.mxu0
  %132 = vmatprep.mubr.f32.mxu0 0.0
  %133 = vmatmul.mubr.f32.gmra.mxu0 %v43
  %v134 = vpop.f32.mrf.mxu0
  %v135 = vadd.f32 %v36, %v134
  %v136 = vpop.f32.mrf.mxu0
  %137 = vmatprep.mubr.f32.mxu0 0.0
  %138 = vmatmul.mubr.f32.gmra.mxu0 %v46
  %v139 = vpop.f32.mrf.mxu0
  %v140 = vadd.f32 %v36, %v139
  %v141 = vpop.f32.mrf.mxu0
  %142 = vmatprep.mubr.f32.mxu0 0.0
  %143 = vmatmul.mubr.f32.gmra.mxu0 %v49
  %v144 = vpop.f32.mrf.mxu0
  %v145 = vadd.f32 %v36, %v144
  %v146 = vpop.f32.mrf.mxu0
  %147 = vmatprep.mubr.f32.mxu0 0.0
  %148 = vmatmul.mubr.f32.gmra.mxu0 %v52
  %v149 = vpop.f32.mrf.mxu0
  %v150 = vadd.f32 %v36, %v149
  %v151 = vpop.f32.mrf.mxu0
  %152 = vmatprep.mubr.f32.mxu0 0.0
  %153 = vmatmul.mubr.f32.gmra.mxu0 %v55
  %v154 = vpop.f32.mrf.mxu0
  %v155 = vadd.f32 %v36, %v154
  %v156 = vpop.f32.mrf.mxu0
  %157 = vmatprep.mubr.f32.mxu0 0.0
  %158 = vmatmul.mubr.f32.gmra.mxu0 %v58
  %v159 = vpop.f32.mrf.mxu0
  %v160 = vadd.f32 %v36, %v159
  %v161 = vpop.f32.mrf.mxu0
  %162 = vmatprep.mubr.f32.mxu0 0.0
  %163 = vmatmul.mubr.f32.gmra.mxu0 %v61
  %v164 = vpop.f32.mrf.mxu0
  %v165 = vadd.f32 %v36, %v164
  %v166 = vpop.f32.mrf.mxu0
  %167 = vdwg.mxu0
  %vm168 = vcmp.gt.f32.partialorder %v130, 20.0
  %vm169 = vcmp.gt.f32.partialorder %v135, 20.0
  %vm170 = vcmp.gt.f32.partialorder %v140, 20.0
  %vm171 = vcmp.gt.f32.partialorder %v145, 20.0
  %vm172 = vcmp.gt.f32.partialorder %v150, 20.0
  %vm173 = vcmp.gt.f32.partialorder %v155, 20.0
  %vm174 = vcmp.gt.f32.partialorder %v160, 20.0
  %vm175 = vcmp.gt.f32.partialorder %v165, 20.0
  %v176 = vmin.f32 %v130, 20.0
  %v177 = vmin.f32 %v135, 20.0
  %v178 = vmin.f32 %v140, 20.0
  %v179 = vmin.f32 %v145, 20.0
  %v180 = vmin.f32 %v150, 20.0
  %v181 = vmin.f32 %v155, 20.0
  %v182 = vmin.f32 %v160, 20.0
  %v183 = vmin.f32 %v165, 20.0
  %v184 = vmul.f32 %v176, 1.442695
  %v185 = vpow.pop %v184
  %v186 = vmul.f32 %v177, 1.442695
  %v187 = vpow.pop %v186
  %v188 = vmul.f32 %v178, 1.442695
  %v189 = vpow.pop %v188
  %v190 = vmul.f32 %v179, 1.442695
  %v191 = vpow.pop %v190
  %v192 = vmul.f32 %v180, 1.442695
  %v193 = vpow.pop %v192
  %v194 = vmul.f32 %v181, 1.442695
  %v195 = vpow.pop %v194
  %v196 = vmul.f32 %v182, 1.442695
  %v197 = vpow.pop %v196
  %v198 = vmul.f32 %v183, 1.442695
  %v199 = vpow.pop %v198
  %v200 = vadd.f32 %v185, 1.0
  %v201 = vlog2.pop %v200
  %v202 = vmul.f32 %v201, 0.6931472
  %v203 = vmul.f32 -0.5, %v185
  %v204 = vadd.f32 %v203, 1.0
  %v205 = vmul.f32 %v204, %v185
  %v206 = vand.u32 2147483647, %v185
  %vm207 = vcmp.lt.f32.partialorder %v206, 0.0004427343
  %v208 = vsel %vm207, %v205, %v202
  %v209 = vadd.f32 %v187, 1.0
  %v210 = vlog2.pop %v209
  %v211 = vmul.f32 %v210, 0.6931472
  %v212 = vmul.f32 -0.5, %v187
  %v213 = vadd.f32 %v212, 1.0
  %v214 = vmul.f32 %v213, %v187
  %v215 = vand.u32 2147483647, %v187
  %vm216 = vcmp.lt.f32.partialorder %v215, 0.0004427343
  %v217 = vsel %vm216, %v214, %v211
  %v218 = vadd.f32 %v189, 1.0
  %v219 = vlog2.pop %v218
  %v220 = vmul.f32 %v219, 0.6931472
  %v221 = vmul.f32 -0.5, %v189
  %v222 = vadd.f32 %v221, 1.0
  %v223 = vmul.f32 %v222, %v189
  %v224 = vand.u32 2147483647, %v189
  %vm225 = vcmp.lt.f32.partialorder %v224, 0.0004427343
  %v226 = vsel %vm225, %v223, %v220
  %v227 = vadd.f32 %v191, 1.0
  %v228 = vlog2.pop %v227
  %v229 = vmul.f32 %v228, 0.6931472
  %v230 = vmul.f32 -0.5, %v191
  %v231 = vadd.f32 %v230, 1.0
  %v232 = vmul.f32 %v231, %v191
  %v233 = vand.u32 2147483647, %v191
  %vm234 = vcmp.lt.f32.partialorder %v233, 0.0004427343
  %v235 = vsel %vm234, %v232, %v229
  %v236 = vadd.f32 %v193, 1.0
  %v237 = vlog2.pop %v236
  %v238 = vmul.f32 %v237, 0.6931472
  %v239 = vmul.f32 -0.5, %v193
  %v240 = vadd.f32 %v239, 1.0
  %v241 = vmul.f32 %v240, %v193
  %v242 = vand.u32 2147483647, %v193
  %vm243 = vcmp.lt.f32.partialorder %v242, 0.0004427343
  %v244 = vsel %vm243, %v241, %v238
  %v245 = vadd.f32 %v195, 1.0
  %v246 = vlog2.pop %v245
  %v247 = vmul.f32 %v246, 0.6931472
  %v248 = vmul.f32 -0.5, %v195
  %v249 = vadd.f32 %v248, 1.0
  %v250 = vmul.f32 %v249, %v195
  %v251 = vand.u32 2147483647, %v195
  %vm252 = vcmp.lt.f32.partialorder %v251, 0.0004427343
  %v253 = vsel %vm252, %v250, %v247
  %v254 = vadd.f32 %v197, 1.0
  %v255 = vlog2.pop %v254
  %v256 = vmul.f32 %v255, 0.6931472
  %v257 = vmul.f32 -0.5, %v197
  %v258 = vadd.f32 %v257, 1.0
  %v259 = vmul.f32 %v258, %v197
  %v260 = vand.u32 2147483647, %v197
  %vm261 = vcmp.lt.f32.partialorder %v260, 0.0004427343
  %v262 = vsel %vm261, %v259, %v256
  %v263 = vadd.f32 %v199, 1.0
  %v264 = vlog2.pop %v263
  %v265 = vmul.f32 %v264, 0.6931472
  %v266 = vmul.f32 -0.5, %v199
  %v267 = vadd.f32 %v266, 1.0
  %v268 = vmul.f32 %v267, %v199
  %v269 = vand.u32 2147483647, %v199
  %vm270 = vcmp.lt.f32.partialorder %v269, 0.0004427343
  %v271 = vsel %vm270, %v268, %v265
  %v272 = vsel %vm168, %v130, %v208
  %v273 = vsel %vm169, %v135, %v217
  %v274 = vsel %vm170, %v140, %v226
  %v275 = vsel %vm171, %v145, %v235
  %v276 = vsel %vm172, %v150, %v244
  %v277 = vsel %vm173, %v155, %v253
  %v278 = vsel %vm174, %v160, %v262
  %v279 = vsel %vm175, %v165, %v271
  %v280 = vld [vmem:[%s3] sm:$0xff]
  %v281 = vld [vmem:[%s3 + $0x8] sm:$0xff]
  %v282 = vld [vmem:[%s3 + $0x10] sm:$0xff]
  %v283 = vld [vmem:[%s3 + $0x18] sm:$0xff]
  %v285 = vlaneseq
  %v286 = vshrl.u32 %v285, 7
  %v287 = vsub.s32 0, %v286
  %v288 = vrot.slane %v29, %v287
  %vm290 = vcmask 261120
  %v292 = vsel %vm290, %v272, 0
  %v295 = vsel %vm290, %v273, 0
  %v298 = vsel %vm290, %v274, 0
  %v301 = vsel %vm290, %v275, 0
  %v304 = vsel %vm290, %v276, 0
  %v307 = vsel %vm290, %v277, 0
  %v310 = vsel %vm290, %v278, 0
  %v313 = vsel %vm290, %v279, 0
  %315 = vmatprep.subr.mxu0 0.0
  %316 = vmatpush1.msra.mxu0 0.0
  %317 = vmatprep.subr.mxu0 0.0
  %318 = vmatpush1.msra.mxu0 0.0
  %319 = vmatprep.subr.mxu0 0.0
  %320 = vmatpush1.msra.mxu0 0.0
  %321 = vmatprep.subr.mxu0 0.0
  %322 = vmatpush1.msra.mxu0 0.0
  %323 = vmatprep.subr.mxu0 0.0
  %324 = vmatpush1.msra.mxu0 0.0
  %325 = vmatprep.subr.mxu0 0.0
  %326 = vmatpush1.msra.mxu0 0.0
  %327 = vmatprep.subr.mxu0 0.0
  %328 = vmatpush1.msra.mxu0 0.0
  %329 = vmatprep.subr.mxu0 0.0
  %330 = vmatpush1.msra.mxu0 0.0
  %331 = vmatprep.subr.mxu0 0.0
  %332 = vmatpush1.msra.mxu0 0.0
  %333 = vmatprep.subr.mxu0 0.0
  %334 = vmatpush1.msra.mxu0 0.0
  %335 = vmatprep.subr.mxu0 0.0
  %336 = vmatpush1.msra.mxu0 0.0
  %337 = vmatprep.subr.mxu0 0.0
  %338 = vmatpush1.msra.mxu0 0.0
  %339 = vmatprep.subr.mxu0 0.0
  %340 = vmatpush1.msra.mxu0 %v283
  %341 = vmatprep.subr.mxu0 0.0
  %342 = vmatpush1.msra.mxu0 %v282
  %343 = vmatprep.subr.mxu0 0.0
  %344 = vmatpush1.msra.mxu0 %v281
  %345 = vmatprep.subr.mxu0 0.0
  %346 = vmatpush1.msra.mxu0 %v280
  %347 = vmatprep.subr.mxu0 0.0
  %348 = vmatpush2.msra.mxu0 0.0
  %349 = vmatprep.subr.mxu0 0.0
  %350 = vmatpush2.msra.mxu0 0.0
  %351 = vmatprep.subr.mxu0 0.0
  %352 = vmatpush2.msra.mxu0 0.0
  %353 = vmatprep.subr.mxu0 0.0
  %354 = vmatpush2.msra.mxu0 0.0
  %355 = vmatprep.subr.mxu0 0.0
  %356 = vmatpush2.msra.mxu0 0.0
  %357 = vmatprep.subr.mxu0 0.0
  %358 = vmatpush2.msra.mxu0 0.0
  %359 = vmatprep.subr.mxu0 0.0
  %360 = vmatpush2.msra.mxu0 0.0
  %361 = vmatprep.subr.mxu0 0.0
  %362 = vmatpush2.msra.mxu0 0.0
  %363 = vmatprep.subr.mxu0 0.0
  %364 = vmatpush2.msra.mxu0 0.0
  %365 = vmatprep.subr.mxu0 0.0
  %366 = vmatpush2.msra.mxu0 0.0
  %367 = vmatprep.subr.mxu0 0.0
  %368 = vmatpush2.msra.mxu0 0.0
  %369 = vmatprep.subr.mxu0 0.0
  %370 = vmatpush2.msra.mxu0 0.0
  %371 = vmatprep.subr.mxu0 0.0
  %372 = vmatpush2.msra.mxu0 0.0
  %373 = vmatprep.subr.mxu0 0.0
  %374 = vmatpush2.msra.mxu0 0.0
  %375 = vmatprep.subr.mxu0 0.0
  %376 = vmatpush2.msra.mxu0 0.0
  %377 = vmatprep.subr.mxu0 0.0
  %378 = vmatpush2.msra.mxu0 0.0
  %379 = vmatprep.mubr.f32.mxu0 0.0
  %380 = vmatmul.mubr.f32.gmra.mxu0 %v292
  %v381 = vpop.f32.mrf.mxu0
  %v382 = vadd.f32 %v288, %v381
  %v383 = vpop.f32.mrf.mxu0
  %384 = vmatprep.mubr.f32.mxu0 0.0
  %385 = vmatmul.mubr.f32.gmra.mxu0 %v295
  %v386 = vpop.f32.mrf.mxu0
  %v387 = vadd.f32 %v288, %v386
  %v388 = vpop.f32.mrf.mxu0
  %389 = vmatprep.mubr.f32.mxu0 0.0
  %390 = vmatmul.mubr.f32.gmra.mxu0 %v298
  %v391 = vpop.f32.mrf.mxu0
  %v392 = vadd.f32 %v288, %v391
  %v393 = vpop.f32.mrf.mxu0
  %394 = vmatprep.mubr.f32.mxu0 0.0
  %395 = vmatmul.mubr.f32.gmra.mxu0 %v301
  %v396 = vpop.f32.mrf.mxu0
  %v397 = vadd.f32 %v288, %v396
  %v398 = vpop.f32.mrf.mxu0
  %399 = vmatprep.mubr.f32.mxu0 0.0
  %400 = vmatmul.mubr.f32.gmra.mxu0 %v304
  %v401 = vpop.f32.mrf.mxu0
  %v402 = vadd.f32 %v288, %v401
  %v403 = vpop.f32.mrf.mxu0
  %404 = vmatprep.mubr.f32.mxu0 0.0
  %405 = vmatmul.mubr.f32.gmra.mxu0 %v307
  %v406 = vpop.f32.mrf.mxu0
  %v407 = vadd.f32 %v288, %v406
  %v408 = vpop.f32.mrf.mxu0
  %409 = vmatprep.mubr.f32.mxu0 0.0
  %410 = vmatmul.mubr.f32.gmra.mxu0 %v310
  %v411 = vpop.f32.mrf.mxu0
  %v412 = vadd.f32 %v288, %v411
  %v413 = vpop.f32.mrf.mxu0
  %414 = vmatprep.mubr.f32.mxu0 0.0
  %415 = vmatmul.mubr.f32.gmra.mxu0 %v313
  %v416 = vpop.f32.mrf.mxu0
  %v417 = vadd.f32 %v288, %v416
  %v418 = vpop.f32.mrf.mxu0
  %419 = vdwg.mxu0
  %420 = vst.msk [vmem:[%s5] sm:$0xff] %vm38, %v20
  %421 = vst.msk [vmem:[%s5 + $0x8] sm:$0xff] %vm38, %v21
  %422 = vst.msk [vmem:[%s5 + $0x10] sm:$0xff] %vm38, %v22
  %423 = vst.msk [vmem:[%s5 + $0x18] sm:$0xff] %vm38, %v23
  %424 = vst.msk [vmem:[%s5 + $0x20] sm:$0xff] %vm38, %v24
  %425 = vst.msk [vmem:[%s5 + $0x28] sm:$0xff] %vm38, %v25
  %426 = vst.msk [vmem:[%s5 + $0x30] sm:$0xff] %vm38, %v26
  %427 = vst.msk [vmem:[%s5 + $0x38] sm:$0xff] %vm38, %v27
  %436 = vrot.lane.b32.xlu0 %v382, 16
  %v437 = vpop.permute.xlu0 %436
  %438 = vrot.lane.b32.xlu0 %v387, 16
  %v439 = vpop.permute.xlu0 %438
  %440 = vrot.lane.b32.xlu0 %v392, 16
  %v441 = vpop.permute.xlu0 %440
  %442 = vrot.lane.b32.xlu0 %v397, 16
  %v443 = vpop.permute.xlu0 %442
  %444 = vrot.lane.b32.xlu0 %v402, 16
  %v445 = vpop.permute.xlu0 %444
  %446 = vrot.lane.b32.xlu0 %v407, 16
  %v447 = vpop.permute.xlu0 %446
  %448 = vrot.lane.b32.xlu0 %v412, 16
  %v449 = vpop.permute.xlu0 %448
  %450 = vrot.lane.b32.xlu0 %v417, 16
  %v451 = vpop.permute.xlu0 %450
  %v460 = vadd.f32 %v20, %v437
  %v461 = vadd.f32 %v21, %v439
  %v462 = vadd.f32 %v22, %v441
  %v463 = vadd.f32 %v23, %v443
  %v464 = vadd.f32 %v24, %v445
  %v465 = vadd.f32 %v25, %v447
  %v466 = vadd.f32 %v26, %v449
  %v467 = vadd.f32 %v27, %v451
  %vm468 = vcmask 261248
  %469 = vst.msk [vmem:[%s5] sm:$0xff] %vm468, %v460
  %470 = vst.msk [vmem:[%s5 + $0x8] sm:$0xff] %vm468, %v461
  %471 = vst.msk [vmem:[%s5 + $0x10] sm:$0xff] %vm468, %v462
  %472 = vst.msk [vmem:[%s5 + $0x18] sm:$0xff] %vm468, %v463
  %473 = vst.msk [vmem:[%s5 + $0x20] sm:$0xff] %vm468, %v464
  %474 = vst.msk [vmem:[%s5 + $0x28] sm:$0xff] %vm468, %v465
  %475 = vst.msk [vmem:[%s5 + $0x30] sm:$0xff] %vm468, %v466
  %476 = vst.msk [vmem:[%s5 + $0x38] sm:$0xff] %vm468, %v467
  // Predicated region
  $region22: #{tpu_custom_call.1} parent=0 // pred_check
    _
  $region23: #{tpu_custom_call.1} parent=0 // pred_check_branch
    %478 = sbr.rel (0) target = $region25
  $region24: #{tpu_custom_call.1} parent=0 // pred_region
    _
  $region25: #{tpu_custom_call.1} parent=0 // pred_fallthru
    _
  // Predicated region
  $region26: #{tpu_custom_call.1} parent=0 // pred_check
    _
  $region27: #{tpu_custom_call.1} parent=0 // pred_check_branch
    %480 = sbr.rel (0) target = $region29
  $region28: #{tpu_custom_call.1} parent=0 // pred_region
    _
  $region29: #{tpu_custom_call.1} parent=0 // pred_fallthru
    _

</llo_original>
